<compile_context>
chip_gen: v6e
topology: v6e:2x2x1
jax: 0.10.0
libtpu: 0.0.40
codegen_flags: <defaults>
</compile_context>

<pallas_src>
import math
import functools

import jax
import jax.numpy as jnp
from jax import lax
from jax.experimental import pallas as pl
from jax.experimental.pallas import tpu as pltpu


def _round_up(x, m):
    return (x + m - 1) // m * m


def _choose_tile(dim, pref, quantum=128):
    """Largest tile <= pref that divides `dim` and is a multiple of `quantum`;
    falls back to the full dim (full-extent blocks are always layout-legal)."""
    if dim <= pref:
        return dim
    t = (pref // quantum) * quantum
    while t >= quantum:
        if dim % t == 0:
            return t
        t -= quantum
    return dim


def _geglu_kernel(x_ref, wh_ref, wg_ref, b_ref, o_ref, acc_h_ref, acc_g_ref):
    # x_ref:   (tm, tk)        activation tile
    # wh_ref:  (tn, tk)        hidden-half weight tile (native nn.Linear layout)
    # wg_ref:  (tn, tk)        gate-half  weight tile
    # b_ref:   (2, tn)         row 0 = hidden bias, row 1 = gate bias
    # o_ref:   (tm, tn)        output tile
    # acc_*:   (tm, tn) f32    K-resident accumulators (VMEM scratch)
    k = pl.program_id(2)

    @pl.when(k == 0)
    def _():
        acc_h_ref[...] = jnp.zeros_like(acc_h_ref)
        acc_g_ref[...] = jnp.zeros_like(acc_g_ref)

    x = x_ref[...]
    # x @ W.T : contract the last dim of both operands (weight kept un-transposed).
    dn = (((1,), (1,)), ((), ()))
    acc_h_ref[...] += lax.dot_general(
        x, wh_ref[...], dn, preferred_element_type=jnp.float32)
    acc_g_ref[...] += lax.dot_general(
        x, wg_ref[...], dn, preferred_element_type=jnp.float32)

    @pl.when(k == pl.num_programs(2) - 1)
    def _():
        b = b_ref[...].astype(jnp.float32)
        h = acc_h_ref[...] + b[0:1, :]
        g = acc_g_ref[...] + b[1:2, :]
        # Exact GELU (erf form), matching torch.nn.functional.gelu default.
        gelu_g = 0.5 * g * (1.0 + lax.erf(g * (1.0 / math.sqrt(2.0))))
        o_ref[...] = (h * gelu_g).astype(o_ref.dtype)


@functools.partial(jax.jit, static_argnames=("tm", "tn", "tk", "mxu_dtype"))
def geglu_forward(hidden_states, weight, bias=None, *, tm=256, tn=256, tk=512,
                  mxu_dtype=jnp.bfloat16):
    """GEGLU forward.

    hidden_states: (batch, seq, dim_in)
    weight:        (2*dim_out, dim_in)   -- nn.Linear weight layout (NOT transposed)
    bias:          (2*dim_out,) or None
    mxu_dtype:     dtype for the MXU operands (None => keep input dtype).
                   Accumulation and GELU are always f32.
    returns:       (batch, seq, dim_out)
    """
    B, S, dim_in = hidden_states.shape
    two_dout, _ = weight.shape
    dim_out = two_dout // 2
    out_dtype = hidden_states.dtype

    M = B * S
    x2d = hidden_states.reshape(M, dim_in)

    # Optional low-precision MXU inputs (f32 accumulation inside the kernel).
    if mxu_dtype is not None:
        x2d = x2d.astype(mxu_dtype)
        w = weight.astype(mxu_dtype)
    else:
        w = weight

    if bias is None:
        b2 = jnp.zeros((2, dim_out), dtype=jnp.float32)
    else:
        b2 = bias.reshape(2, dim_out)

    # Layout-legal tiles: last dims multiples of 128 (or full), 2nd-last of 8.
    tm_eff = min(tm, _round_up(M, 8))
    tn_eff = _choose_tile(dim_out, tn, 128)
    tk_eff = _choose_tile(dim_in, tk, 128)

    # Pad M so the grid covers every row (no silently dropped tail tile).
    Mp = _round_up(M, tm_eff)
    if Mp != M:
        x2d = jnp.pad(x2d, ((0, Mp - M), (0, 0)))

    nj = dim_out // tn_eff
    nk = dim_in // tk_eff
    grid = (Mp // tm_eff, nj, nk)

    out2d = pl.pallas_call(
        _geglu_kernel,
        out_shape=jax.ShapeDtypeStruct((Mp, dim_out), out_dtype),
        grid_spec=pltpu.PrefetchScalarGridSpec(
            num_scalar_prefetch=0,
            grid=grid,
            in_specs=[
                pl.BlockSpec((tm_eff, tk_eff), lambda i, j, k: (i, k)),       # x
                pl.BlockSpec((tn_eff, tk_eff), lambda i, j, k: (j, k)),       # W hidden rows
                pl.BlockSpec((tn_eff, tk_eff), lambda i, j, k: (j + nj, k)),  # W gate rows
                pl.BlockSpec((2, tn_eff), lambda i, j, k: (0, j)),            # bias (both halves)
            ],
            out_specs=pl.BlockSpec((tm_eff, tn_eff), lambda i, j, k: (i, j)),
            scratch_shapes=[
                pltpu.VMEM((tm_eff, tn_eff), jnp.float32),  # hidden accumulator
                pltpu.VMEM((tm_eff, tn_eff), jnp.float32),  # gate accumulator
            ],
        ),
        compiler_params=pltpu.CompilerParams(
            dimension_semantics=("parallel", "parallel", "arbitrary"),
            vmem_limit_bytes=48 * 1024 * 1024,  # within v7x's 64 MiB physical VMEM
        ),
    )(x2d, w, w, b2)  # same weight array fed twice; BlockSpecs pick the halves

    if Mp != M:
        out2d = out2d[:M]
    return out2d.reshape(B, S, dim_out)


def geglu_reference(hidden_states, weight, bias):
    """Pure-JAX reference matching PyTorch GEGLU.forward."""
    y = jnp.einsum("bsi,oi->bso", hidden_states, weight)
    if bias is not None:
        y = y + bias
    dim_out = weight.shape[0] // 2
    h, g = y[..., :dim_out], y[..., dim_out:]
    gelu_g = 0.5 * g * (1.0 + lax.erf(g / math.sqrt(2.0)))
    return h * gelu_g


if __name__ == "__main__":
    # Small shapes consistent with the module (tokens of width dim_in).
    batch, seq, dim_in, dim_out = 2, 8, 128, 128

    key = jax.random.PRNGKey(0)
    k_x, k_w, k_b = jax.random.split(key, 3)

    hidden_states = jax.random.normal(k_x, (batch, seq, dim_in), dtype=jnp.float32)
    # nn.Linear parameter shapes: (2*dim_out, dim_in), (2*dim_out,)
    weight = jax.random.normal(k_w, (2 * dim_out, dim_in), dtype=jnp.float32) * 0.02
    bias = jax.random.normal(k_b, (2 * dim_out,), dtype=jnp.float32) * 0.01

    ref = geglu_reference(hidden_states, weight, bias)

    # Full-precision path (strict check vs. reference).
    out_f32 = geglu_forward(hidden_states, weight, bias, mxu_dtype=None)
    out_f32 = jax.block_until_ready(out_f32)
    assert out_f32.shape == (batch, seq, dim_out)
    assert jnp.allclose(out_f32, ref, atol=1e-4, rtol=1e-4), "f32 mismatch vs reference"

    # Default bf16-MXU path (f32 accumulation); looser tolerance vs. f32 reference.
    out_bf16 = geglu_forward(hidden_states, weight, bias)
    out_bf16 = jax.block_until_ready(out_bf16)
    assert out_bf16.shape == (batch, seq, dim_out)
    assert jnp.allclose(out_bf16, ref, atol=5e-2, rtol=5e-2), "bf16 mismatch vs reference"

    # TODO(synk): the LoRACompatibleLinear `scale` argument (non-PEFT path) is
    # a host-side scalar multiplier on the LoRA delta only; plain Linear
    # semantics (scale unused) are implemented here.
    print("KERNEL_OK")
</pallas_src>

<mosaic_0001>
module attributes {stable_mosaic.version = 11 : i64} {
  func.func @_geglu_kernel(%arg0: i32, %arg1: i32, %arg2: i32, %arg3: memref<16x128xf32, #tpu.memory_space<vmem>>, %arg4: memref<128x128xf32, #tpu.memory_space<vmem>>, %arg5: memref<128x128xf32, #tpu.memory_space<vmem>>, %arg6: memref<2x128xf32, #tpu.memory_space<vmem>>, %arg7: memref<16x128xf32, #tpu.memory_space<vmem>>, %arg8: memref<16x128xf32, #tpu.memory_space<vmem>>, %arg9: memref<16x128xf32, #tpu.memory_space<vmem>>) attributes {dimension_semantics = [#tpu.dimension_semantics<parallel>, #tpu.dimension_semantics<parallel>, #tpu.dimension_semantics<arbitrary>], iteration_bounds = array<i64: 1, 1, 1>, scalar_prefetch = 0 : i64, scratch_operands = 2 : i64, tpu.core_type = #tpu.core_type<tc>, window_params = [{transform_indices = @transform_0, window_bounds = array<i64: 16, 128>}, {transform_indices = @transform_1, window_bounds = array<i64: 128, 128>}, {transform_indices = @transform_2, window_bounds = array<i64: 128, 128>}, {transform_indices = @transform_3, window_bounds = array<i64: 2, 128>}, {transform_indices = @transform_4, window_bounds = array<i64: 16, 128>}]} {
    %c0_i32 = arith.constant 0 : i32
    %0 = arith.cmpi eq, %arg2, %c0_i32 : i32
    %1 = arith.extui %0 : i1 to i32
    %c0_i32_0 = arith.constant 0 : i32
    %2 = arith.cmpi ne, %1, %c0_i32_0 : i32
    scf.if %2 {
      %cst_17 = arith.constant 0.000000e+00 : f32
      %17 = vector.broadcast %cst_17 : f32 to vector<16x128xf32>
      %c0_18 = arith.constant 0 : index
      %c0_19 = arith.constant 0 : index
      %18 = vector.load %arg8[%c0_18, %c0_19] : memref<16x128xf32, #tpu.memory_space<vmem>>, vector<16x128xf32>
      tpu.vector_store %arg8[%c0_18, %c0_19], %17 {strides = array<i32>} : memref<16x128xf32, #tpu.memory_space<vmem>>, vector<16x128xf32>,
      %cst_20 = arith.constant 0.000000e+00 : f32
      %19 = vector.broadcast %cst_20 : f32 to vector<16x128xf32>
      %c0_21 = arith.constant 0 : index
      %c0_22 = arith.constant 0 : index
      %20 = vector.load %arg9[%c0_21, %c0_22] : memref<16x128xf32, #tpu.memory_space<vmem>>, vector<16x128xf32>
      tpu.vector_store %arg9[%c0_21, %c0_22], %19 {strides = array<i32>} : memref<16x128xf32, #tpu.memory_space<vmem>>, vector<16x128xf32>,
    } else {
    }
    %c0 = arith.constant 0 : index
    %c0_1 = arith.constant 0 : index
    %3 = vector.load %arg3[%c0, %c0_1] : memref<16x128xf32, #tpu.memory_space<vmem>>, vector<16x128xf32>
    %c0_2 = arith.constant 0 : index
    %c0_3 = arith.constant 0 : index
    %4 = vector.load %arg8[%c0_2, %c0_3] : memref<16x128xf32, #tpu.memory_space<vmem>>, vector<16x128xf32>
    %c0_4 = arith.constant 0 : index
    %c0_5 = arith.constant 0 : index
    %5 = vector.load %arg4[%c0_4, %c0_5] : memref<128x128xf32, #tpu.memory_space<vmem>>, vector<128x128xf32>
    %cst = arith.constant dense<0.000000e+00> : vector<16x128xf32>
    %6 = tpu.matmul %3, %5, %cst {dimension_numbers = #tpu.dot_dimension_numbers<[1], [1], [0], [0], [0, 0, 1, 0], [], []>} : vector<16x128xf32>, vector<128x128xf32>, vector<16x128xf32> -> vector<16x128xf32>
    %7 = arith.addf %4, %6 : vector<16x128xf32>
    %c0_6 = arith.constant 0 : index
    %c0_7 = arith.constant 0 : index
    %8 = vector.load %arg8[%c0_6, %c0_7] : memref<16x128xf32, #tpu.memory_space<vmem>>, vector<16x128xf32>
    tpu.vector_store %arg8[%c0_6, %c0_7], %7 {strides = array<i32>} : memref<16x128xf32, #tpu.memory_space<vmem>>, vector<16x128xf32>,
    %c0_8 = arith.constant 0 : index
    %c0_9 = arith.constant 0 : index
    %9 = vector.load %arg9[%c0_8, %c0_9] : memref<16x128xf32, #tpu.memory_space<vmem>>, vector<16x128xf32>
    %c0_10 = arith.constant 0 : index
    %c0_11 = arith.constant 0 : index
    %10 = vector.load %arg5[%c0_10, %c0_11] : memref<128x128xf32, #tpu.memory_space<vmem>>, vector<128x128xf32>
    %cst_12 = arith.constant dense<0.000000e+00> : vector<16x128xf32>
    %11 = tpu.matmul %3, %10, %cst_12 {dimension_numbers = #tpu.dot_dimension_numbers<[1], [1], [0], [0], [0, 0, 1, 0], [], []>} : vector<16x128xf32>, vector<128x128xf32>, vector<16x128xf32> -> vector<16x128xf32>
    %12 = arith.addf %9, %11 : vector<16x128xf32>
    %c0_13 = arith.constant 0 : index
    %c0_14 = arith.constant 0 : index
    %13 = vector.load %arg9[%c0_13, %c0_14] : memref<16x128xf32, #tpu.memory_space<vmem>>, vector<16x128xf32>
    tpu.vector_store %arg9[%c0_13, %c0_14], %12 {strides = array<i32>} : memref<16x128xf32, #tpu.memory_space<vmem>>, vector<16x128xf32>,
    %c0_i32_15 = arith.constant 0 : i32
    %14 = arith.cmpi eq, %arg2, %c0_i32_15 : i32
    %15 = arith.extui %14 : i1 to i32
    %c0_i32_16 = arith.constant 0 : i32
    %16 = arith.cmpi ne, %15, %c0_i32_16 : i32
    scf.if %16 {
      %c0_17 = arith.constant 0 : index
      %c0_18 = arith.constant 0 : index
      %17 = vector.load %arg6[%c0_17, %c0_18] : memref<2x128xf32, #tpu.memory_space<vmem>>, vector<2x128xf32>
      %c0_19 = arith.constant 0 : index
      %c0_20 = arith.constant 0 : index
      %18 = vector.load %arg8[%c0_19, %c0_20] : memref<16x128xf32, #tpu.memory_space<vmem>>, vector<16x128xf32>
      %19 = vector.extract_strided_slice %17 {offsets = [0, 0], sizes = [1, 128], strides = [1, 1]} : vector<2x128xf32> to vector<1x128xf32>
      %20 = vector.broadcast %19 : vector<1x128xf32> to vector<16x128xf32>
      %21 = arith.addf %18, %20 : vector<16x128xf32>
      %c0_21 = arith.constant 0 : index
      %c0_22 = arith.constant 0 : index
      %22 = vector.load %arg9[%c0_21, %c0_22] : memref<16x128xf32, #tpu.memory_space<vmem>>, vector<16x128xf32>
      %23 = vector.extract_strided_slice %17 {offsets = [1, 0], sizes = [1, 128], strides = [1, 1]} : vector<2x128xf32> to vector<1x128xf32>
      %24 = vector.broadcast %23 : vector<1x128xf32> to vector<16x128xf32>
      %25 = arith.addf %22, %24 : vector<16x128xf32>
      %cst_23 = arith.constant 5.000000e-01 : f32
      %26 = vector.broadcast %cst_23 : f32 to vector<16x128xf32>
      %27 = arith.mulf %26, %25 : vector<16x128xf32>
      %cst_24 = arith.constant 0.707106769 : f32
      %28 = vector.broadcast %cst_24 : f32 to vector<16x128xf32>
      %29 = arith.mulf %25, %28 : vector<16x128xf32>
      %30 = math.erf %29 : vector<16x128xf32>
      %cst_25 = arith.constant 1.000000e+00 : f32
      %31 = vector.broadcast %cst_25 : f32 to vector<16x128xf32>
      %32 = arith.addf %31, %30 : vector<16x128xf32>
      %33 = arith.mulf %27, %32 : vector<16x128xf32>
      %34 = arith.mulf %21, %33 : vector<16x128xf32>
      %c0_26 = arith.constant 0 : index
      %c0_27 = arith.constant 0 : index
      %35 = vector.load %arg7[%c0_26, %c0_27] : memref<16x128xf32, #tpu.memory_space<vmem>>, vector<16x128xf32>
      tpu.vector_store %arg7[%c0_26, %c0_27], %34 {strides = array<i32>} : memref<16x128xf32, #tpu.memory_space<vmem>>, vector<16x128xf32>,
    } else {
    }
    return
  }
  func.func @transform_0(%arg0: i32, %arg1: i32, %arg2: i32) -> (i32, i32) {
    %c0_i32 = arith.constant 0 : i32
    return %arg0, %arg2 : i32, i32
  }
  func.func @transform_1(%arg0: i32, %arg1: i32, %arg2: i32) -> (i32, i32) {
    %c0_i32 = arith.constant 0 : i32
    return %arg1, %arg2 : i32, i32
  }
  func.func @transform_2(%arg0: i32, %arg1: i32, %arg2: i32) -> (i32, i32) {
    %c1_i32 = arith.constant 1 : i32
    %0 = arith.addi %arg1, %c1_i32 : i32
    %c0_i32 = arith.constant 0 : i32
    return %0, %arg2 : i32, i32
  }
  func.func @transform_3(%arg0: i32, %arg1: i32, %arg2: i32) -> (i32, i32) {
    %c0_i32 = arith.constant 0 : i32
    %c0_i32_0 = arith.constant 0 : i32
    return %c0_i32, %arg1 : i32, i32
  }
  func.func @transform_4(%arg0: i32, %arg1: i32, %arg2: i32) -> (i32, i32) {
    %c0_i32 = arith.constant 0 : i32
    return %arg0, %arg1 : i32, i32
  }
}

</mosaic_0001>

<llo_original>
// kernel: geglu_forward.1
$region0: #{geglu_forward.1}
  #allocation0 [shape = 'u32[]', space=smem, size = 0x4, offset = 0x4, fixed_abs, tag = 'smem constant byte address 0x4 - core index']
  #allocation1 [shape = 'u32[144,128]{1,0:T(1,128)}', space=vmem, size = 0x12000, scoped, tag = 'internal scratch']
  #allocation2 [shape = 'f32[16,128]{1,0:T(8,128)}', space=vmem, size = 0x2000, scoped, tag = 'scratch operand']
  #allocation3 [shape = 'f32[16,128]{1,0:T(8,128)}', space=vmem, size = 0x2000, scoped, tag = 'scratch operand']
  %s0 = inlined_call_operand.hbm [shape: f32[16,128], index: 0, kind: input, shape index: {}]
  %s1 = inlined_call_operand.hbm [shape: f32[256,128], index: 1, kind: input, shape index: {}, may-alias: {1,2}]
  %s2 = inlined_call_operand.hbm [shape: f32[256,128], index: 2, kind: input, shape index: {}, may-alias: {1,2}]
  %s3 = inlined_call_operand.vmem [shape: f32[2,128], index: 3, kind: input, shape index: {}]
  %s4 = inlined_call_operand.hbm [shape: f32[16,128], index: 4, kind: output, shape index: {}]
  %s5 = sld [smem:[#allocation0]]
  $region46: #{geglu_forward.1} parent=0
    _
  %s7 = ssub.s32 1, %s5
  %s8 = scalar_select 0, %s7, %s5
  $region1: #{geglu_forward.1} parent=0
    #allocation4 [shape = 'u8[8192]{0}', space=vmem, size = 0x2000, scoped, tag = 'input window, operand 0, single buffered']
    #allocation5 [shape = 's32[1]{0}', space=sflag, size = 0x4, scoped, tag = 'scoped memory for geglu_forward.1']
    #allocation6 [shape = 's32[1]{0}', space=sflag, size = 0x4, scoped, tag = 'scoped memory for geglu_forward.1']
    #allocation7 [shape = 'u8[65536]{0}', space=vmem, size = 0x10000, scoped, tag = 'input window, operand 1, single buffered']
    #allocation8 [shape = 's32[1]{0}', space=sflag, size = 0x4, scoped, tag = 'scoped memory for geglu_forward.1']
    #allocation9 [shape = 'u8[65536]{0}', space=vmem, size = 0x10000, scoped, tag = 'input window, operand 2, single buffered']
    #allocation10 [shape = 'u8[8192]{0}', space=vmem, size = 0x2000, scoped, tag = 'output window, operand 0, single buffered']
    %9 = vsyncpa [#allocation5], 0
    %10 = vsyncpa [#allocation8], 0
    %11 = vsyncpa [#allocation6], 0
    // Predicated region
    $region2: #{geglu_forward.1} parent=1 // pred_check
      _
    $region3: #{geglu_forward.1} parent=1 // pred_check_branch
      %13 = sbr.rel (0) target = $region5
    $region4: #{geglu_forward.1} parent=1 // pred_region
      %s15 = ssub.s32 256, 256
      %16 = vsyncadd [#allocation5], %s15
      %s17 = sshll.u32 [#allocation4], 4
      %s18 = int_to_ptr.vmem [resolvable:$true] %s17
      %23 = dma.hbm_to_vmem [thread:$0]  %s0, 256, %s18, [#allocation5], 128, 128, 8
    $region5: #{geglu_forward.1} parent=1 // pred_fallthru
      _
    // Predicated region
    $region6: #{geglu_forward.1} parent=1 // pred_check
      _
    $region7: #{geglu_forward.1} parent=1 // pred_check_branch
      %25 = sbr.rel (0) target = $region9
    $region8: #{geglu_forward.1} parent=1 // pred_region
      %s27 = ssub.s32 2048, 2048
      %28 = vsyncadd [#allocation8], %s27
      %s29 = sshll.u32 [#allocation7], 4
      %s30 = int_to_ptr.vmem [resolvable:$true] %s29
      %35 = dma.hbm_to_vmem [thread:$0]  %s1, 2048, %s30, [#allocation8], 128, 128, 8
    $region9: #{geglu_forward.1} parent=1 // pred_fallthru
      _
    // Predicated region
    $region10: #{geglu_forward.1} parent=1 // pred_check
      _
    $region11: #{geglu_forward.1} parent=1 // pred_check_branch
      %37 = sbr.rel (0) target = $region13
    $region12: #{geglu_forward.1} parent=1 // pred_region
      %s38 = sadd.s32 0, 1
      %s39 = smul.u32 16, %s38
      %s41 = ssub.s32 2048, 2048
      %42 = vsyncadd [#allocation8], %s41
      %s43 = smul.addr %s39, 128
      %s44 = scalar_lea.hbm %s2, %s43
      %s45 = sshll.u32 [#allocation9], 4
      %s46 = int_to_ptr.vmem [resolvable:$true] %s45
      %51 = dma.hbm_to_vmem [thread:$0]  %s44, 2048, %s46, [#allocation8], 128, 128, 8
    $region13: #{geglu_forward.1} parent=1 // pred_fallthru
      _
    // Predicated region
    $region14: #{geglu_forward.1} parent=1 // pred_check
      _
    $region15: #{geglu_forward.1} parent=1 // pred_check_branch
      %53 = sbr.rel (0) target = $region17
    $region16: #{geglu_forward.1} parent=1 // pred_region
      _
    $region17: #{geglu_forward.1} parent=1 // pred_fallthru
      _
    // Predicated region
    $region18: #{geglu_forward.1} parent=1 // pred_check
      _
    $region19: #{geglu_forward.1} parent=1 // pred_check_branch
      %55 = sbr.rel (0) target = $region21
    $region20: #{geglu_forward.1} parent=1 // pred_region
      %56 = dma.done [#allocation5], 256
    $region21: #{geglu_forward.1} parent=1 // pred_fallthru
      _
    // Predicated region
    $region22: #{geglu_forward.1} parent=1 // pred_check
      _
    $region23: #{geglu_forward.1} parent=1 // pred_check_branch
      %58 = sbr.rel (0) target = $region25
    $region24: #{geglu_forward.1} parent=1 // pred_region
      %59 = dma.done [#allocation8], 2048
    $region25: #{geglu_forward.1} parent=1 // pred_fallthru
      _
    // Predicated region
    $region26: #{geglu_forward.1} parent=1 // pred_check
      _
    $region27: #{geglu_forward.1} parent=1 // pred_check_branch
      %61 = sbr.rel (0) target = $region29
    $region28: #{geglu_forward.1} parent=1 // pred_region
      %62 = dma.done [#allocation8], 2048
    $region29: #{geglu_forward.1} parent=1 // pred_fallthru
      _
    %s63 = sadd.s32 0, 1
    %s64 = smul.u32 16, %s63
    %p65 = scmp.eq.s32.totalorder 0, 0
    // Predicated region
    $region30: #{geglu_forward.1} parent=1 // pred_check
      %p66 = pneg %p65
    $region31: #{geglu_forward.1} parent=1 // pred_check_branch
      %68 = sbr.rel (%p66) target = $region33
    $region32: #{geglu_forward.1} parent=1 // pred_region
      %69 = vst [vmem:[#allocation2] sm:$0xff] 0.0
      %70 = vst [vmem:[#allocation2 + $0x8] sm:$0xff] 0.0
      %71 = vst [vmem:[#allocation3] sm:$0xff] 0.0
      %72 = vst [vmem:[#allocation3 + $0x8] sm:$0xff] 0.0
    $region33: #{geglu_forward.1} parent=1 // pred_fallthru
      _
    %v73 = vld [vmem:[#allocation4] sm:$0xff]
    %v74 = vld [vmem:[#allocation4 + $0x8] sm:$0xff]
    %v75 = vld [vmem:[#allocation2] sm:$0xff]
    %v76 = vld [vmem:[#allocation2 + $0x8] sm:$0xff]
    %v77 = vld [vmem:[#allocation7] sm:$0xff]
    %v78 = vld [vmem:[#allocation7 + $0x8] sm:$0xff]
    %v79 = vld [vmem:[#allocation7 + $0x10] sm:$0xff]
    %v80 = vld [vmem:[#allocation7 + $0x18] sm:$0xff]
    %v81 = vld [vmem:[#allocation7 + $0x20] sm:$0xff]
    %v82 = vld [vmem:[#allocation7 + $0x28] sm:$0xff]
    %v83 = vld [vmem:[#allocation7 + $0x30] sm:$0xff]
    %v84 = vld [vmem:[#allocation7 + $0x38] sm:$0xff]
    %v85 = vld [vmem:[#allocation7 + $0x40] sm:$0xff]
    %v86 = vld [vmem:[#allocation7 + $0x48] sm:$0xff]
    %v87 = vld [vmem:[#allocation7 + $0x50] sm:$0xff]
    %v88 = vld [vmem:[#allocation7 + $0x58] sm:$0xff]
    %v89 = vld [vmem:[#allocation7 + $0x60] sm:$0xff]
    %v90 = vld [vmem:[#allocation7 + $0x68] sm:$0xff]
    %v91 = vld [vmem:[#allocation7 + $0x70] sm:$0xff]
    %v92 = vld [vmem:[#allocation7 + $0x78] sm:$0xff]
    %93 = vmatprep.subr.mxu0 0.0
    %94 = vmatpush1.xpose.msra.mxu0 %v92
    %95 = vmatprep.subr.mxu0 0.0
    %96 = vmatpush1.xpose.msra.mxu0 %v91
    %97 = vmatprep.subr.mxu0 0.0
    %98 = vmatpush1.xpose.msra.mxu0 %v90
    %99 = vmatprep.subr.mxu0 0.0
    %100 = vmatpush1.xpose.msra.mxu0 %v89
    %101 = vmatprep.subr.mxu0 0.0
    %102 = vmatpush1.xpose.msra.mxu0 %v88
    %103 = vmatprep.subr.mxu0 0.0
    %104 = vmatpush1.xpose.msra.mxu0 %v87
    %105 = vmatprep.subr.mxu0 0.0
    %106 = vmatpush1.xpose.msra.mxu0 %v86
    %107 = vmatprep.subr.mxu0 0.0
    %108 = vmatpush1.xpose.msra.mxu0 %v85
    %109 = vmatprep.subr.mxu0 0.0
    %110 = vmatpush1.xpose.msra.mxu0 %v84
    %111 = vmatprep.subr.mxu0 0.0
    %112 = vmatpush1.xpose.msra.mxu0 %v83
    %113 = vmatprep.subr.mxu0 0.0
    %114 = vmatpush1.xpose.msra.mxu0 %v82
    %115 = vmatprep.subr.mxu0 0.0
    %116 = vmatpush1.xpose.msra.mxu0 %v81
    %117 = vmatprep.subr.mxu0 0.0
    %118 = vmatpush1.xpose.msra.mxu0 %v80
    %119 = vmatprep.subr.mxu0 0.0
    %120 = vmatpush1.xpose.msra.mxu0 %v79
    %121 = vmatprep.subr.mxu0 0.0
    %122 = vmatpush1.xpose.msra.mxu0 %v78
    %123 = vmatprep.subr.mxu0 0.0
    %124 = vmatpush1.xpose.msra.mxu0 %v77
    %125 = vmatprep.subr.mxu0 0.0
    %126 = vmatpush2.xpose.msra.mxu0 0.0
    %127 = vmatprep.subr.mxu0 0.0
    %128 = vmatpush2.xpose.msra.mxu0 0.0
    %129 = vmatprep.subr.mxu0 0.0
    %130 = vmatpush2.xpose.msra.mxu0 0.0
    %131 = vmatprep.subr.mxu0 0.0
    %132 = vmatpush2.xpose.msra.mxu0 0.0
    %133 = vmatprep.subr.mxu0 0.0
    %134 = vmatpush2.xpose.msra.mxu0 0.0
    %135 = vmatprep.subr.mxu0 0.0
    %136 = vmatpush2.xpose.msra.mxu0 0.0
    %137 = vmatprep.subr.mxu0 0.0
    %138 = vmatpush2.xpose.msra.mxu0 0.0
    %139 = vmatprep.subr.mxu0 0.0
    %140 = vmatpush2.xpose.msra.mxu0 0.0
    %141 = vmatprep.subr.mxu0 0.0
    %142 = vmatpush2.xpose.msra.mxu0 0.0
    %143 = vmatprep.subr.mxu0 0.0
    %144 = vmatpush2.xpose.msra.mxu0 0.0
    %145 = vmatprep.subr.mxu0 0.0
    %146 = vmatpush2.xpose.msra.mxu0 0.0
    %147 = vmatprep.subr.mxu0 0.0
    %148 = vmatpush2.xpose.msra.mxu0 0.0
    %149 = vmatprep.subr.mxu0 0.0
    %150 = vmatpush2.xpose.msra.mxu0 0.0
    %151 = vmatprep.subr.mxu0 0.0
    %152 = vmatpush2.xpose.msra.mxu0 0.0
    %153 = vmatprep.subr.mxu0 0.0
    %154 = vmatpush2.xpose.msra.mxu0 0.0
    %155 = vmatprep.subr.mxu0 0.0
    %156 = vmatpush2.xpose.msra.mxu0 0.0
    %157 = vmatprep.mubr.f32.mxu0 0.0
    %158 = vmatmul.mubr.f32.gmra.mxu0 %v73
    %v159 = vpop.f32.mrf.mxu0
    %v160 = vadd.f32 0.0, %v159
    %v161 = vpop.f32.mrf.mxu0
    %162 = vmatprep.mubr.f32.mxu0 0.0
    %163 = vmatmul.mubr.f32.gmra.mxu0 %v74
    %v164 = vpop.f32.mrf.mxu0
    %v165 = vadd.f32 0.0, %v164
    %v166 = vpop.f32.mrf.mxu0
    %167 = vdwg.mxu0
    %v168 = vadd.f32 %v75, %v160
    %v169 = vadd.f32 %v76, %v165
    %170 = vst [vmem:[#allocation2] sm:$0xff] %v168
    %171 = vst [vmem:[#allocation2 + $0x8] sm:$0xff] %v169
    %v172 = vld [vmem:[#allocation3] sm:$0xff]
    %v173 = vld [vmem:[#allocation3 + $0x8] sm:$0xff]
    %v174 = vld [vmem:[#allocation9] sm:$0xff]
    %v175 = vld [vmem:[#allocation9 + $0x8] sm:$0xff]
    %v176 = vld [vmem:[#allocation9 + $0x10] sm:$0xff]
    %v177 = vld [vmem:[#allocation9 + $0x18] sm:$0xff]
    %v178 = vld [vmem:[#allocation9 + $0x20] sm:$0xff]
    %v179 = vld [vmem:[#allocation9 + $0x28] sm:$0xff]
    %v180 = vld [vmem:[#allocation9 + $0x30] sm:$0xff]
    %v181 = vld [vmem:[#allocation9 + $0x38] sm:$0xff]
    %v182 = vld [vmem:[#allocation9 + $0x40] sm:$0xff]
    %v183 = vld [vmem:[#allocation9 + $0x48] sm:$0xff]
    %v184 = vld [vmem:[#allocation9 + $0x50] sm:$0xff]
    %v185 = vld [vmem:[#allocation9 + $0x58] sm:$0xff]
    %v186 = vld [vmem:[#allocation9 + $0x60] sm:$0xff]
    %v187 = vld [vmem:[#allocation9 + $0x68] sm:$0xff]
    %v188 = vld [vmem:[#allocation9 + $0x70] sm:$0xff]
    %v189 = vld [vmem:[#allocation9 + $0x78] sm:$0xff]
    %190 = vmatprep.subr.mxu0 0.0
    %191 = vmatpush1.xpose.msra.mxu0 %v189
    %192 = vmatprep.subr.mxu0 0.0
    %193 = vmatpush1.xpose.msra.mxu0 %v188
    %194 = vmatprep.subr.mxu0 0.0
    %195 = vmatpush1.xpose.msra.mxu0 %v187
    %196 = vmatprep.subr.mxu0 0.0
    %197 = vmatpush1.xpose.msra.mxu0 %v186
    %198 = vmatprep.subr.mxu0 0.0
    %199 = vmatpush1.xpose.msra.mxu0 %v185
    %200 = vmatprep.subr.mxu0 0.0
    %201 = vmatpush1.xpose.msra.mxu0 %v184
    %202 = vmatprep.subr.mxu0 0.0
    %203 = vmatpush1.xpose.msra.mxu0 %v183
    %204 = vmatprep.subr.mxu0 0.0
    %205 = vmatpush1.xpose.msra.mxu0 %v182
    %206 = vmatprep.subr.mxu0 0.0
    %207 = vmatpush1.xpose.msra.mxu0 %v181
    %208 = vmatprep.subr.mxu0 0.0
    %209 = vmatpush1.xpose.msra.mxu0 %v180
    %210 = vmatprep.subr.mxu0 0.0
    %211 = vmatpush1.xpose.msra.mxu0 %v179
    %212 = vmatprep.subr.mxu0 0.0
    %213 = vmatpush1.xpose.msra.mxu0 %v178
    %214 = vmatprep.subr.mxu0 0.0
    %215 = vmatpush1.xpose.msra.mxu0 %v177
    %216 = vmatprep.subr.mxu0 0.0
    %217 = vmatpush1.xpose.msra.mxu0 %v176
    %218 = vmatprep.subr.mxu0 0.0
    %219 = vmatpush1.xpose.msra.mxu0 %v175
    %220 = vmatprep.subr.mxu0 0.0
    %221 = vmatpush1.xpose.msra.mxu0 %v174
    %222 = vmatprep.subr.mxu0 0.0
    %223 = vmatpush2.xpose.msra.mxu0 0.0
    %224 = vmatprep.subr.mxu0 0.0
    %225 = vmatpush2.xpose.msra.mxu0 0.0
    %226 = vmatprep.subr.mxu0 0.0
    %227 = vmatpush2.xpose.msra.mxu0 0.0
    %228 = vmatprep.subr.mxu0 0.0
    %229 = vmatpush2.xpose.msra.mxu0 0.0
    %230 = vmatprep.subr.mxu0 0.0
    %231 = vmatpush2.xpose.msra.mxu0 0.0
    %232 = vmatprep.subr.mxu0 0.0
    %233 = vmatpush2.xpose.msra.mxu0 0.0
    %234 = vmatprep.subr.mxu0 0.0
    %235 = vmatpush2.xpose.msra.mxu0 0.0
    %236 = vmatprep.subr.mxu0 0.0
    %237 = vmatpush2.xpose.msra.mxu0 0.0
    %238 = vmatprep.subr.mxu0 0.0
    %239 = vmatpush2.xpose.msra.mxu0 0.0
    %240 = vmatprep.subr.mxu0 0.0
    %241 = vmatpush2.xpose.msra.mxu0 0.0
    %242 = vmatprep.subr.mxu0 0.0
    %243 = vmatpush2.xpose.msra.mxu0 0.0
    %244 = vmatprep.subr.mxu0 0.0
    %245 = vmatpush2.xpose.msra.mxu0 0.0
    %246 = vmatprep.subr.mxu0 0.0
    %247 = vmatpush2.xpose.msra.mxu0 0.0
    %248 = vmatprep.subr.mxu0 0.0
    %249 = vmatpush2.xpose.msra.mxu0 0.0
    %250 = vmatprep.subr.mxu0 0.0
    %251 = vmatpush2.xpose.msra.mxu0 0.0
    %252 = vmatprep.subr.mxu0 0.0
    %253 = vmatpush2.xpose.msra.mxu0 0.0
    %254 = vmatprep.mubr.f32.mxu0 0.0
    %255 = vmatmul.mubr.f32.gmra.mxu0 %v73
    %v256 = vpop.f32.mrf.mxu0
    %v257 = vadd.f32 0.0, %v256
    %v258 = vpop.f32.mrf.mxu0
    %259 = vmatprep.mubr.f32.mxu0 0.0
    %260 = vmatmul.mubr.f32.gmra.mxu0 %v74
    %v261 = vpop.f32.mrf.mxu0
    %v262 = vadd.f32 0.0, %v261
    %v263 = vpop.f32.mrf.mxu0
    %264 = vdwg.mxu0
    %v265 = vadd.f32 %v172, %v257
    %v266 = vadd.f32 %v173, %v262
    %267 = vst [vmem:[#allocation3] sm:$0xff] %v265
    %268 = vst [vmem:[#allocation3 + $0x8] sm:$0xff] %v266
    // Predicated region
    $region34: #{geglu_forward.1} parent=1 // pred_check
      %p269 = pneg %p65
    $region35: #{geglu_forward.1} parent=1 // pred_check_branch
      %271 = sbr.rel (%p269) target = $region37
    $region36: #{geglu_forward.1} parent=1 // pred_region
      %v272 = vld [vmem:[%s3] sm:$0x3]
      %v273 = vld [vmem:[#allocation2] sm:$0xff]
      %v274 = vld [vmem:[#allocation2 + $0x8] sm:$0xff]
      %v275 = vlaneseq
      %v276 = vshrl.u32 %v275, 7
      %v277 = vsub.s32 0, %v276
      %v278 = vrot.slane %v272, %v277
      %v279 = vadd.f32 %v273, %v278
      %v280 = vadd.f32 %v274, %v278
      %v281 = vld [vmem:[#allocation3] sm:$0xff]
      %v282 = vld [vmem:[#allocation3 + $0x8] sm:$0xff]
      %v283 = vlaneseq
      %v284 = vshrl.u32 %v283, 7
      %v285 = vsub.s32 1, %v284
      %v286 = vrot.slane %v272, %v285
      %v287 = vadd.f32 %v281, %v286
      %v288 = vadd.f32 %v282, %v286
      %v289 = vmul.f32 %v287, 0.5
      %v290 = vmul.f32 %v288, 0.5
      %v291 = vmul.f32 %v287, 0.70710677
      %v292 = vmul.f32 %v288, 0.70710677
      %v293 = verf.f32.pop %v291
      %v294 = verf.f32.pop %v292
      %v295 = vadd.f32 %v293, 1.0
      %v296 = vadd.f32 %v294, 1.0
      %v297 = vmul.f32 %v289, %v295
      %v298 = vmul.f32 %v290, %v296
      %v299 = vmul.f32 %v279, %v297
      %v300 = vmul.f32 %v280, %v298
      %301 = vst [vmem:[#allocation10] sm:$0xff] %v299
      %302 = vst [vmem:[#allocation10 + $0x8] sm:$0xff] %v300
    $region37: #{geglu_forward.1} parent=1 // pred_fallthru
      _
    // Predicated region
    $region38: #{geglu_forward.1} parent=1 // pred_check
      _
    $region39: #{geglu_forward.1} parent=1 // pred_check_branch
      %304 = sbr.rel (0) target = $region41
    $region40: #{geglu_forward.1} parent=1 // pred_region
      %s306 = ssub.s32 256, 256
      %307 = vsyncadd [#allocation6], %s306
      %s308 = sshll.u32 [#allocation10], 4
      %s309 = int_to_ptr.vmem [resolvable:$true] %s308
      %314 = dma.vmem_to_hbm [thread:$0]  %s309, 256, %s4, [#allocation6], 128, 128, 8
    $region41: #{geglu_forward.1} parent=1 // pred_fallthru
      _
    // Predicated region
    $region42: #{geglu_forward.1} parent=1 // pred_check
      _
    $region43: #{geglu_forward.1} parent=1 // pred_check_branch
      %316 = sbr.rel (0) target = $region45
    $region44: #{geglu_forward.1} parent=1 // pred_region
      %317 = dma.done [#allocation6], 256
    $region45: #{geglu_forward.1} parent=1 // pred_fallthru
      _
    %318 = vsyncpa [#allocation5], 1
    %319 = vsyncpa [#allocation8], 1
    %320 = vsyncpa [#allocation6], 1

</llo_original>
